<compile_context>
chip_gen: v7x
topology: tpu7x:2x2x1
jax: 0.10.0
libtpu: 0.0.40
codegen_flags: <defaults>
</compile_context>

<pallas_src>
import functools

import jax
import jax.numpy as jnp
from jax.experimental import pallas as pl
from jax.experimental.pallas import tpu as pltpu


def _round_up(n, m):
    return ((n + m - 1) // m) * m


def _choose_batch_tile(B, batch_tile, min_grid_steps):
    """Pick the batch tile.

    Big tiles amortize per-grid-step overhead (measured: 256-row tiles reach
    ~63% of HBM roofline vs ~85%+ at 512-1024+ rows), while we also try to keep
    >= min_grid_steps grid steps so v7x's two TensorCores both get work when
    the batch is big enough to split.
    """
    tb = min(batch_tile, max(8, _round_up(pl.cdiv(B, min_grid_steps), 8)))
    tb = min(tb, _round_up(B, 8))  # never bigger than the (8-padded) batch
    return max(tb, 8)


def _fused_mlp_kernel(x_ref, *refs, acts, out_cols):
    """Fused bias-free MLP: ((x @ W0) act0 @ W1) act1 ... in one VMEM pass.

    x_ref     : (TB, n_in)                 VMEM
    refs[:-1] : pre-transposed weights     VMEM (tiny, resident across steps)
    refs[-1]  : (TB, out_cols) output      VMEM (single store at the end)
    """
    w_refs = refs[:-1]
    o_ref = refs[-1]
    h = x_ref[...]
    for w_ref, act in zip(w_refs, acts):
        h = jnp.dot(h, w_ref[...], preferred_element_type=jnp.float32)  # MXU
        if act == "relu":
            h = jnp.maximum(h, 0.0)                                      # VPU
        else:
            # PyTorch F.softplus (beta=1, threshold=20): x if x > 20 else log1p(exp(x))
            h = jnp.where(h > 20.0, h, jnp.log1p(jnp.exp(jnp.minimum(h, 20.0))))  # EUP
    o_ref[...] = h[:, :out_cols].astype(o_ref.dtype)


def fused_mlp(x, *weights_t, acts, batch_tile=2048, min_grid_steps=2,
              dense_out_max_rows=4096):
    """Whole MLP in a single pallas_call.

    x         : (B, n_in) f32
    weights_t : pre-transposed, lane-padded weights; layer i is (in_i, out_i);
                the final weight is padded to 128 output columns.
    acts      : per-layer 'relu'/'softplus' (static)
    """
    B, n_in = x.shape
    w_out = weights_t[-1].shape[1]          # 128 (final weight is lane-padded)

    tb = _choose_batch_tile(B, batch_tile, min_grid_steps)
    grid = (pl.cdiv(B, tb),)                # ragged last block; no host-side pad

    # Lane-dense output slab for latency-bound (small/medium B) cases; skinny
    # (B, 1) output for large B to avoid 128x output HBM inflation.
    dense = B <= dense_out_max_rows
    out_cols = w_out if dense else 1

    in_specs = [pl.BlockSpec((tb, n_in), lambda i: (i, 0))]
    for wt in weights_t:
        in_specs.append(pl.BlockSpec(wt.shape, lambda i: (0, 0)))  # resident

    out = pl.pallas_call(
        functools.partial(_fused_mlp_kernel, acts=acts, out_cols=out_cols),
        out_shape=jax.ShapeDtypeStruct((B, out_cols), x.dtype),
        grid=grid,
        in_specs=in_specs,
        out_specs=pl.BlockSpec((tb, out_cols), lambda i: (i, 0)),
        compiler_params=pltpu.CompilerParams(
            dimension_semantics=("parallel",),   # shards batch across v7x's 2 TCs
        ),
    )(x, *weights_t)
    if dense:
        out = out[:, :1]
    return out


class MultiLayerFeedForward:
    """JAX/Pallas port of Multi_layer_feed_forward_model (forward pass only).

    Layers: n_input -> n_hidden[0] -> ... -> n_hidden[-1] -> 1, all bias-free.
    Activation: softplus on layer j == len(n_hidden) - 1, ReLU everywhere else
    (including the final layer), exactly matching the PyTorch module.
    """
    # TODO(synk): the training loop / Adam optimizer / L1 & Poisson losses in
    # the original module are host-side training utilities and are not ported.

    LANE = 128  # pad hidden (and final) feature dims to full vreg lane width

    def __init__(self, n_input, n_hidden, key):
        self.n_input = n_input
        self.n_hidden = list(n_hidden)
        n_h = [n_input] + self.n_hidden + [1]
        n_layers = len(self.n_hidden) + 1

        # The zero-padded-lane softplus trick requires softplus to never be the
        # final (sliced-back) layer; by construction j == len(n_hidden)-1 is
        # never the last layer index, assert it anyway.
        assert len(self.n_hidden) - 1 != n_layers - 1, \
            "softplus layer must not be the final layer"

        # nn.Linear-layout weights (n_out, n_in), deterministic U(-1/sqrt(fan_in), ..)
        self.weights = []
        for i in range(n_layers):
            key, sub = jax.random.split(key)
            bound = 1.0 / float(n_h[i]) ** 0.5
            w = jax.random.uniform(
                sub, (n_h[i + 1], n_h[i]), dtype=jnp.float32,
                minval=-bound, maxval=bound,
            )
            self.weights.append(w)

        # Transpose ONCE (no per-forward w.T) and zero-pad feature dims to 128
        # lanes (including the final 1-wide layer, so the kernel can emit a
        # lane-dense output slab).  Padded hidden columns only ever multiply
        # zero rows of the next padded weight -> results are bit-exact.
        padded_dims = (
            [n_input]
            + [_round_up(h, self.LANE) for h in self.n_hidden]
            + [self.LANE]
        )
        self.weights_t = []
        for i, w in enumerate(self.weights):
            wt = w.T  # (n_in_i, n_out_i)
            in_pad = padded_dims[i] - wt.shape[0]
            out_pad = padded_dims[i + 1] - wt.shape[1]
            self.weights_t.append(jnp.pad(wt, ((0, in_pad), (0, out_pad))))

        acts = tuple(
            "softplus" if j == len(self.n_hidden) - 1 else "relu"
            for j in range(n_layers)
        )
        self._forward = jax.jit(functools.partial(fused_mlp, acts=acts))

    def forward(self, x):
        return self._forward(x, *self.weights_t)


def _reference(model, x):
    """Plain-JAX reference (same math, unpadded weights)."""
    ref = x
    for j, w in enumerate(model.weights):
        ref = ref @ w.T
        if j == len(model.n_hidden) - 1:
            ref = jnp.where(ref > 20.0, ref, jnp.log1p(jnp.exp(jnp.minimum(ref, 20.0))))
        else:
            ref = jnp.maximum(ref, 0.0)
    return ref


if __name__ == "__main__":
    key = jax.random.PRNGKey(0)
    key, k_x, k_x2, k_w = jax.random.split(key, 4)

    n_input = 32
    n_hidden = [32, 16]
    model = MultiLayerFeedForward(n_input, n_hidden, k_w)

    # Case 1: small aligned batch (grid == 1, lane-dense output path)
    batch = 8
    x = jax.random.normal(k_x, (batch, n_input), dtype=jnp.float32)
    out = jax.block_until_ready(model.forward(x))
    assert out.shape == (batch, 1)
    assert jnp.allclose(out, _reference(model, x), atol=1e-5, rtol=1e-5)

    # Case 2: ragged batch (not a multiple of the tile / of 8) exercising the
    # cdiv grid with a masked partial last block and the 2-step grid.
    batch2 = 20
    x2 = jax.random.normal(k_x2, (batch2, n_input), dtype=jnp.float32)
    out2 = jax.block_until_ready(model.forward(x2))
    assert out2.shape == (batch2, 1)
    assert jnp.allclose(out2, _reference(model, x2), atol=1e-5, rtol=1e-5)

    print("KERNEL_OK")
</pallas_src>

<mosaic_0001>
module attributes {stable_mosaic.version = 11 : i64} {
  func.func @_fused_mlp_kernel(%arg0: i32, %arg1: memref<8x32xf32, #tpu.memory_space<vmem>>, %arg2: memref<32x128xf32, #tpu.memory_space<vmem>>, %arg3: memref<128x128xf32, #tpu.memory_space<vmem>>, %arg4: memref<128x128xf32, #tpu.memory_space<vmem>>, %arg5: memref<8x128xf32, #tpu.memory_space<vmem>>) attributes {dimension_semantics = [#tpu.dimension_semantics<parallel>], iteration_bounds = array<i64: 1>, scalar_prefetch = 0 : i64, scratch_operands = 0 : i64, tpu.core_type = #tpu.core_type<tc>, window_params = [{transform_indices = @transform_0, window_bounds = array<i64: 8, 32>}, {pipeline_mode = #tpu.pipeline_mode<synchronous>, transform_indices = @transform_1, window_bounds = array<i64: 32, 128>}, {pipeline_mode = #tpu.pipeline_mode<synchronous>, transform_indices = @transform_2, window_bounds = array<i64: 128, 128>}, {pipeline_mode = #tpu.pipeline_mode<synchronous>, transform_indices = @transform_3, window_bounds = array<i64: 128, 128>}, {transform_indices = @transform_4, window_bounds = array<i64: 8, 128>}]} {
    %c0 = arith.constant 0 : index
    %c0_0 = arith.constant 0 : index
    %0 = vector.load %arg1[%c0, %c0_0] : memref<8x32xf32, #tpu.memory_space<vmem>>, vector<8x32xf32>
    %c0_1 = arith.constant 0 : index
    %c0_2 = arith.constant 0 : index
    %1 = vector.load %arg2[%c0_1, %c0_2] : memref<32x128xf32, #tpu.memory_space<vmem>>, vector<32x128xf32>
    %cst = arith.constant dense<0.000000e+00> : vector<8x128xf32>
    %2 = tpu.matmul %0, %1, %cst {dimension_numbers = #tpu.dot_dimension_numbers<[1], [0], [0], [1], [0, 0, 1, 1], [], []>} : vector<8x32xf32>, vector<32x128xf32>, vector<8x128xf32> -> vector<8x128xf32>
    %cst_3 = arith.constant 0.000000e+00 : f32
    %3 = vector.broadcast %cst_3 : f32 to vector<8x128xf32>
    %4 = arith.maximumf %2, %3 : vector<8x128xf32>
    %c0_4 = arith.constant 0 : index
    %c0_5 = arith.constant 0 : index
    %5 = vector.load %arg3[%c0_4, %c0_5] : memref<128x128xf32, #tpu.memory_space<vmem>>, vector<128x128xf32>
    %cst_6 = arith.constant dense<0.000000e+00> : vector<8x128xf32>
    %6 = tpu.matmul %4, %5, %cst_6 {dimension_numbers = #tpu.dot_dimension_numbers<[1], [0], [0], [1], [0, 0, 1, 1], [], []>} : vector<8x128xf32>, vector<128x128xf32>, vector<8x128xf32> -> vector<8x128xf32>
    %cst_7 = arith.constant 2.000000e+01 : f32
    %7 = vector.broadcast %cst_7 : f32 to vector<8x128xf32>
    %8 = arith.cmpf ogt, %6, %7 : vector<8x128xf32>
    %cst_8 = arith.constant 2.000000e+01 : f32
    %9 = vector.broadcast %cst_8 : f32 to vector<8x128xf32>
    %10 = arith.minimumf %6, %9 : vector<8x128xf32>
    %11 = math.exp %10 : vector<8x128xf32>
    %12 = math.log1p %11 : vector<8x128xf32>
    %13 = arith.select %8, %6, %12 : vector<8x128xi1>, vector<8x128xf32>
    %c0_9 = arith.constant 0 : index
    %c0_10 = arith.constant 0 : index
    %14 = vector.load %arg4[%c0_9, %c0_10] : memref<128x128xf32, #tpu.memory_space<vmem>>, vector<128x128xf32>
    %cst_11 = arith.constant dense<0.000000e+00> : vector<8x128xf32>
    %15 = tpu.matmul %13, %14, %cst_11 {dimension_numbers = #tpu.dot_dimension_numbers<[1], [0], [0], [1], [0, 0, 1, 1], [], []>} : vector<8x128xf32>, vector<128x128xf32>, vector<8x128xf32> -> vector<8x128xf32>
    %cst_12 = arith.constant 0.000000e+00 : f32
    %16 = vector.broadcast %cst_12 : f32 to vector<8x128xf32>
    %17 = arith.maximumf %15, %16 : vector<8x128xf32>
    %c0_13 = arith.constant 0 : index
    %c0_14 = arith.constant 0 : index
    %18 = vector.load %arg5[%c0_13, %c0_14] : memref<8x128xf32, #tpu.memory_space<vmem>>, vector<8x128xf32>
    tpu.vector_store %arg5[%c0_13, %c0_14], %17 {strides = array<i32>} : memref<8x128xf32, #tpu.memory_space<vmem>>, vector<8x128xf32>,
    return
  }
  func.func @transform_0(%arg0: i32) -> (i32, i32) {
    %c0_i32 = arith.constant 0 : i32
    %c0_i32_0 = arith.constant 0 : i32
    return %arg0, %c0_i32 : i32, i32
  }
  func.func @transform_1(%arg0: i32) -> (i32, i32) {
    %c0_i32 = arith.constant 0 : i32
    %c0_i32_0 = arith.constant 0 : i32
    %c0_i32_1 = arith.constant 0 : i32
    return %c0_i32, %c0_i32_0 : i32, i32
  }
  func.func @transform_2(%arg0: i32) -> (i32, i32) {
    %c0_i32 = arith.constant 0 : i32
    %c0_i32_0 = arith.constant 0 : i32
    %c0_i32_1 = arith.constant 0 : i32
    return %c0_i32, %c0_i32_0 : i32, i32
  }
  func.func @transform_3(%arg0: i32) -> (i32, i32) {
    %c0_i32 = arith.constant 0 : i32
    %c0_i32_0 = arith.constant 0 : i32
    %c0_i32_1 = arith.constant 0 : i32
    return %c0_i32, %c0_i32_0 : i32, i32
  }
  func.func @transform_4(%arg0: i32) -> (i32, i32) {
    %c0_i32 = arith.constant 0 : i32
    %c0_i32_0 = arith.constant 0 : i32
    return %arg0, %c0_i32 : i32, i32
  }
}

</mosaic_0001>

<llo_original>
// kernel: fused_mlp.1
$region0: #{fused_mlp.1}
  #allocation0 [shape = 'u32[]', space=smem, size = 0x4, offset = 0x4, fixed_abs, tag = 'smem constant byte address 0x4 - core index']
  #allocation1 [shape = 'u32[144,128]{1,0:T(1,128)}', space=vmem, size = 0x12000, scoped, tag = 'internal scratch']
  %s0 = inlined_call_operand.hbm [shape: f32[8,32], index: 0, kind: input, shape index: {}]
  %s1 = inlined_call_operand.hbm [shape: f32[32,128], index: 1, kind: input, shape index: {}]
  %s2 = inlined_call_operand.hbm [shape: f32[128,128], index: 2, kind: input, shape index: {}]
  %s3 = inlined_call_operand.hbm [shape: f32[128,128], index: 3, kind: input, shape index: {}]
  %s4 = inlined_call_operand.vmem [shape: f32[8,128], index: 4, kind: output, shape index: {}]
  %s5 = sld [smem:[#allocation0]]
  $region42: #{fused_mlp.1} parent=0
    _
  %s7 = ssub.s32 1, %s5
  %s8 = scalar_select 0, %s7, %s5
  $region1: #{fused_mlp.1} parent=0
    #allocation2 [shape = 'u8[4096]{0}', space=vmem, size = 0x1000, scoped, tag = 'input window, operand 0, single buffered']
    #allocation3 [shape = 's32[1]{0}', space=sflag, size = 0x4, scoped, tag = 'scoped memory for fused_mlp.1']
    #allocation4 [shape = 'u8[16384]{0}', space=vmem, size = 0x4000, scoped, tag = 'input window, operand 1, single buffered']
    #allocation5 [shape = 's32[1]{0}', space=sflag, size = 0x4, scoped, tag = 'scoped memory for fused_mlp.1']
    #allocation6 [shape = 'u8[65536]{0}', space=vmem, size = 0x10000, scoped, tag = 'input window, operand 2, single buffered']
    #allocation7 [shape = 'u8[65536]{0}', space=vmem, size = 0x10000, scoped, tag = 'input window, operand 3, single buffered']
    #allocation8 [shape = 's32[1]{0}', space=sflag, size = 0x4, scoped, tag = 'scoped memory for fused_mlp.1']
    %9 = vsyncpa [#allocation3], 0
    %10 = vsyncpa [#allocation5], 0
    %11 = vsyncpa [#allocation8], 0
    // Predicated region
    $region2: #{fused_mlp.1} parent=1 // pred_check
      _
    $region3: #{fused_mlp.1} parent=1 // pred_check_branch
      %13 = sbr.rel (0) target = $region5
    $region4: #{fused_mlp.1} parent=1 // pred_region
      %s15 = ssub.s32 128, 128
      %16 = vsyncadd [#allocation3], %s15
      %s18 = sshll.u32 [#allocation2], 4
      %s19 = int_to_ptr.vmem [resolvable:$true] %s18
      %21 = dma.hbm_to_vmem [thread:$0]  %s0, 128, %s19, [#allocation3]
    $region5: #{fused_mlp.1} parent=1 // pred_fallthru
      _
    // Predicated region
    $region6: #{fused_mlp.1} parent=1 // pred_check
      _
    $region7: #{fused_mlp.1} parent=1 // pred_check_branch
      %23 = sbr.rel (0) target = $region9
    $region8: #{fused_mlp.1} parent=1 // pred_region
      %s25 = ssub.s32 512, 512
      %26 = vsyncadd [#allocation5], %s25
      %s27 = sshll.u32 [#allocation4], 4
      %s28 = int_to_ptr.vmem [resolvable:$true] %s27
      %33 = dma.hbm_to_vmem [thread:$0]  %s1, 512, %s28, [#allocation5], 128, 128, 8
    $region9: #{fused_mlp.1} parent=1 // pred_fallthru
      _
    // Predicated region
    $region10: #{fused_mlp.1} parent=1 // pred_check
      _
    $region11: #{fused_mlp.1} parent=1 // pred_check_branch
      %35 = sbr.rel (0) target = $region13
    $region12: #{fused_mlp.1} parent=1 // pred_region
      %s37 = ssub.s32 2048, 2048
      %38 = vsyncadd [#allocation5], %s37
      %s39 = sshll.u32 [#allocation6], 4
      %s40 = int_to_ptr.vmem [resolvable:$true] %s39
      %45 = dma.hbm_to_vmem [thread:$0]  %s2, 2048, %s40, [#allocation5], 128, 128, 8
    $region13: #{fused_mlp.1} parent=1 // pred_fallthru
      _
    // Predicated region
    $region14: #{fused_mlp.1} parent=1 // pred_check
      _
    $region15: #{fused_mlp.1} parent=1 // pred_check_branch
      %47 = sbr.rel (0) target = $region17
    $region16: #{fused_mlp.1} parent=1 // pred_region
      %s49 = ssub.s32 2048, 2048
      %50 = vsyncadd [#allocation8], %s49
      %s51 = sshll.u32 [#allocation7], 4
      %s52 = int_to_ptr.vmem [resolvable:$true] %s51
      %57 = dma.hbm_to_vmem [thread:$0]  %s3, 2048, %s52, [#allocation8], 128, 128, 8
    $region17: #{fused_mlp.1} parent=1 // pred_fallthru
      _
    // Predicated region
    $region18: #{fused_mlp.1} parent=1 // pred_check
      _
    $region19: #{fused_mlp.1} parent=1 // pred_check_branch
      %59 = sbr.rel (0) target = $region21
    $region20: #{fused_mlp.1} parent=1 // pred_region
      %60 = dma.done [#allocation3], 128
    $region21: #{fused_mlp.1} parent=1 // pred_fallthru
      _
    // Predicated region
    $region22: #{fused_mlp.1} parent=1 // pred_check
      _
    $region23: #{fused_mlp.1} parent=1 // pred_check_branch
      %62 = sbr.rel (0) target = $region25
    $region24: #{fused_mlp.1} parent=1 // pred_region
      %63 = dma.done [#allocation5], 512
    $region25: #{fused_mlp.1} parent=1 // pred_fallthru
      _
    // Predicated region
    $region26: #{fused_mlp.1} parent=1 // pred_check
      _
    $region27: #{fused_mlp.1} parent=1 // pred_check_branch
      %65 = sbr.rel (0) target = $region29
    $region28: #{fused_mlp.1} parent=1 // pred_region
      %66 = dma.done [#allocation5], 2048
    $region29: #{fused_mlp.1} parent=1 // pred_fallthru
      _
    // Predicated region
    $region30: #{fused_mlp.1} parent=1 // pred_check
      _
    $region31: #{fused_mlp.1} parent=1 // pred_check_branch
      %68 = sbr.rel (0) target = $region33
    $region32: #{fused_mlp.1} parent=1 // pred_region
      %69 = dma.done [#allocation8], 2048
    $region33: #{fused_mlp.1} parent=1 // pred_fallthru
      _
    %v70 = vld [vmem:[#allocation2] sm:$0xff]
    %v71 = vld [vmem:[#allocation4] sm:$0xff]
    %v72 = vld [vmem:[#allocation4 + $0x8] sm:$0xff]
    %v73 = vld [vmem:[#allocation4 + $0x10] sm:$0xff]
    %v74 = vld [vmem:[#allocation4 + $0x18] sm:$0xff]
    %vm75 = vcmask 261120
    %v77 = vsel %vm75, %v70, 0
    %79 = vmatprep.subr.mxu0 0.0
    %80 = vmatpush1.msra.mxu0 %v71
    %81 = vmatprep.subr.mxu0 0.0
    %82 = vmatpush1.msra.mxu0 %v72
    %83 = vmatprep.subr.mxu0 0.0
    %84 = vmatpush1.msra.mxu0 %v73
    %85 = vmatprep.subr.mxu0 0.0
    %86 = vmatpush1.msra.mxu0 %v74
    %87 = vmatprep.subr.mxu0 0.0
    %88 = vmatpush1.msra.mxu0 0.0
    %89 = vmatprep.subr.mxu0 0.0
    %90 = vmatpush1.msra.mxu0 0.0
    %91 = vmatprep.subr.mxu0 0.0
    %92 = vmatpush1.msra.mxu0 0.0
    %93 = vmatprep.subr.mxu0 0.0
    %94 = vmatpush1.msra.mxu0 0.0
    %95 = vmatprep.subr.mxu0 0.0
    %96 = vmatpush1.msra.mxu0 0.0
    %97 = vmatprep.subr.mxu0 0.0
    %98 = vmatpush1.msra.mxu0 0.0
    %99 = vmatprep.subr.mxu0 0.0
    %100 = vmatpush1.msra.mxu0 0.0
    %101 = vmatprep.subr.mxu0 0.0
    %102 = vmatpush1.msra.mxu0 0.0
    %103 = vmatprep.subr.mxu0 0.0
    %104 = vmatpush1.msra.mxu0 0.0
    %105 = vmatprep.subr.mxu0 0.0
    %106 = vmatpush1.msra.mxu0 0.0
    %107 = vmatprep.subr.mxu0 0.0
    %108 = vmatpush1.msra.mxu0 0.0
    %109 = vmatprep.subr.mxu0 0.0
    %110 = vmatpush1.msra.mxu0 0.0
    %111 = vmatprep.subr.mxu0 0.0
    %112 = vmatpush1.msra.mxu0 0.0
    %113 = vmatprep.subr.mxu0 0.0
    %114 = vmatpush1.msra.mxu0 0.0
    %115 = vmatprep.subr.mxu0 0.0
    %116 = vmatpush1.msra.mxu0 0.0
    %117 = vmatprep.subr.mxu0 0.0
    %118 = vmatpush1.msra.mxu0 0.0
    %119 = vmatprep.subr.mxu0 0.0
    %120 = vmatpush1.msra.mxu0 0.0
    %121 = vmatprep.subr.mxu0 0.0
    %122 = vmatpush1.msra.mxu0 0.0
    %123 = vmatprep.subr.mxu0 0.0
    %124 = vmatpush1.msra.mxu0 0.0
    %125 = vmatprep.subr.mxu0 0.0
    %126 = vmatpush1.msra.mxu0 0.0
    %127 = vmatprep.subr.mxu0 0.0
    %128 = vmatpush1.msra.mxu0 0.0
    %129 = vmatprep.subr.mxu0 0.0
    %130 = vmatpush1.msra.mxu0 0.0
    %131 = vmatprep.subr.mxu0 0.0
    %132 = vmatpush1.msra.mxu0 0.0
    %133 = vmatprep.subr.mxu0 0.0
    %134 = vmatpush1.msra.mxu0 0.0
    %135 = vmatprep.subr.mxu0 0.0
    %136 = vmatpush1.msra.mxu0 0.0
    %137 = vmatprep.subr.mxu0 0.0
    %138 = vmatpush1.msra.mxu0 0.0
    %139 = vmatprep.subr.mxu0 0.0
    %140 = vmatpush1.msra.mxu0 0.0
    %141 = vmatprep.subr.mxu0 0.0
    %142 = vmatpush1.msra.mxu0 0.0
    %143 = vmatprep.mubr.f32.mxu0 0.0
    %144 = vmatmul.mubr.f32.gmra.mrb[0].mxu0 %v77
    %v145 = vpop.f32.mrb[0].mxu0
    %v146 = vadd.f32 0.0, %v145
    %v147 = vpop.f32.mrb[0].mxu0
    %148 = vdwg.mxu0
    %v149 = vmax.f32 %v146, 0.0
    %v150 = vld [vmem:[#allocation6] sm:$0xff]
    %v151 = vld [vmem:[#allocation6 + $0x8] sm:$0xff]
    %v152 = vld [vmem:[#allocation6 + $0x10] sm:$0xff]
    %v153 = vld [vmem:[#allocation6 + $0x18] sm:$0xff]
    %v154 = vld [vmem:[#allocation6 + $0x20] sm:$0xff]
    %v155 = vld [vmem:[#allocation6 + $0x28] sm:$0xff]
    %v156 = vld [vmem:[#allocation6 + $0x30] sm:$0xff]
    %v157 = vld [vmem:[#allocation6 + $0x38] sm:$0xff]
    %v158 = vld [vmem:[#allocation6 + $0x40] sm:$0xff]
    %v159 = vld [vmem:[#allocation6 + $0x48] sm:$0xff]
    %v160 = vld [vmem:[#allocation6 + $0x50] sm:$0xff]
    %v161 = vld [vmem:[#allocation6 + $0x58] sm:$0xff]
    %v162 = vld [vmem:[#allocation6 + $0x60] sm:$0xff]
    %v163 = vld [vmem:[#allocation6 + $0x68] sm:$0xff]
    %v164 = vld [vmem:[#allocation6 + $0x70] sm:$0xff]
    %v165 = vld [vmem:[#allocation6 + $0x78] sm:$0xff]
    %166 = vmatprep.subr.mxu0 0.0
    %167 = vmatpush1.msra.mxu0 %v150
    %168 = vmatprep.subr.mxu0 0.0
    %169 = vmatpush1.msra.mxu0 %v151
    %170 = vmatprep.subr.mxu0 0.0
    %171 = vmatpush1.msra.mxu0 %v152
    %172 = vmatprep.subr.mxu0 0.0
    %173 = vmatpush1.msra.mxu0 %v153
    %174 = vmatprep.subr.mxu0 0.0
    %175 = vmatpush1.msra.mxu0 %v154
    %176 = vmatprep.subr.mxu0 0.0
    %177 = vmatpush1.msra.mxu0 %v155
    %178 = vmatprep.subr.mxu0 0.0
    %179 = vmatpush1.msra.mxu0 %v156
    %180 = vmatprep.subr.mxu0 0.0
    %181 = vmatpush1.msra.mxu0 %v157
    %182 = vmatprep.subr.mxu0 0.0
    %183 = vmatpush1.msra.mxu0 %v158
    %184 = vmatprep.subr.mxu0 0.0
    %185 = vmatpush1.msra.mxu0 %v159
    %186 = vmatprep.subr.mxu0 0.0
    %187 = vmatpush1.msra.mxu0 %v160
    %188 = vmatprep.subr.mxu0 0.0
    %189 = vmatpush1.msra.mxu0 %v161
    %190 = vmatprep.subr.mxu0 0.0
    %191 = vmatpush1.msra.mxu0 %v162
    %192 = vmatprep.subr.mxu0 0.0
    %193 = vmatpush1.msra.mxu0 %v163
    %194 = vmatprep.subr.mxu0 0.0
    %195 = vmatpush1.msra.mxu0 %v164
    %196 = vmatprep.subr.mxu0 0.0
    %197 = vmatpush1.msra.mxu0 %v165
    %198 = vmatprep.subr.mxu0 0.0
    %199 = vmatpush1.msra.mxu0 0.0
    %200 = vmatprep.subr.mxu0 0.0
    %201 = vmatpush1.msra.mxu0 0.0
    %202 = vmatprep.subr.mxu0 0.0
    %203 = vmatpush1.msra.mxu0 0.0
    %204 = vmatprep.subr.mxu0 0.0
    %205 = vmatpush1.msra.mxu0 0.0
    %206 = vmatprep.subr.mxu0 0.0
    %207 = vmatpush1.msra.mxu0 0.0
    %208 = vmatprep.subr.mxu0 0.0
    %209 = vmatpush1.msra.mxu0 0.0
    %210 = vmatprep.subr.mxu0 0.0
    %211 = vmatpush1.msra.mxu0 0.0
    %212 = vmatprep.subr.mxu0 0.0
    %213 = vmatpush1.msra.mxu0 0.0
    %214 = vmatprep.subr.mxu0 0.0
    %215 = vmatpush1.msra.mxu0 0.0
    %216 = vmatprep.subr.mxu0 0.0
    %217 = vmatpush1.msra.mxu0 0.0
    %218 = vmatprep.subr.mxu0 0.0
    %219 = vmatpush1.msra.mxu0 0.0
    %220 = vmatprep.subr.mxu0 0.0
    %221 = vmatpush1.msra.mxu0 0.0
    %222 = vmatprep.subr.mxu0 0.0
    %223 = vmatpush1.msra.mxu0 0.0
    %224 = vmatprep.subr.mxu0 0.0
    %225 = vmatpush1.msra.mxu0 0.0
    %226 = vmatprep.subr.mxu0 0.0
    %227 = vmatpush1.msra.mxu0 0.0
    %228 = vmatprep.subr.mxu0 0.0
    %229 = vmatpush1.msra.mxu0 0.0
    %230 = vmatprep.mubr.f32.mxu0 0.0
    %231 = vmatmul.mubr.f32.gmra.mrb[0].mxu0 %v149
    %v232 = vpop.f32.mrb[0].mxu0
    %v233 = vadd.f32 0.0, %v232
    %v234 = vpop.f32.mrb[0].mxu0
    %235 = vdwg.mxu0
    %vm236 = vcmp.gt.f32.partialorder %v233, 20.0
    %v237 = vmin.f32 %v233, 20.0
    %v238 = vmul.f32 %v237, 1.442695
    %v239 = vpow.pop %v238
    %v240 = vadd.f32 %v239, 1.0
    %v241 = vlog2.pop %v240
    %v242 = vmul.f32 %v241, 0.6931472
    %v243 = vmul.f32 -0.5, %v239
    %v244 = vadd.f32 %v243, 1.0
    %v245 = vmul.f32 %v244, %v239
    %v246 = vand.u32 2147483647, %v239
    %vm247 = vcmp.lt.f32.partialorder %v246, 0.0004427343
    %v248 = vsel %vm247, %v245, %v242
    %v249 = vsel %vm236, %v233, %v248
    %v250 = vld [vmem:[#allocation7] sm:$0xff]
    %v251 = vld [vmem:[#allocation7 + $0x8] sm:$0xff]
    %v252 = vld [vmem:[#allocation7 + $0x10] sm:$0xff]
    %v253 = vld [vmem:[#allocation7 + $0x18] sm:$0xff]
    %v254 = vld [vmem:[#allocation7 + $0x20] sm:$0xff]
    %v255 = vld [vmem:[#allocation7 + $0x28] sm:$0xff]
    %v256 = vld [vmem:[#allocation7 + $0x30] sm:$0xff]
    %v257 = vld [vmem:[#allocation7 + $0x38] sm:$0xff]
    %v258 = vld [vmem:[#allocation7 + $0x40] sm:$0xff]
    %v259 = vld [vmem:[#allocation7 + $0x48] sm:$0xff]
    %v260 = vld [vmem:[#allocation7 + $0x50] sm:$0xff]
    %v261 = vld [vmem:[#allocation7 + $0x58] sm:$0xff]
    %v262 = vld [vmem:[#allocation7 + $0x60] sm:$0xff]
    %v263 = vld [vmem:[#allocation7 + $0x68] sm:$0xff]
    %v264 = vld [vmem:[#allocation7 + $0x70] sm:$0xff]
    %v265 = vld [vmem:[#allocation7 + $0x78] sm:$0xff]
    %266 = vmatprep.subr.mxu0 0.0
    %267 = vmatpush1.msra.mxu0 %v250
    %268 = vmatprep.subr.mxu0 0.0
    %269 = vmatpush1.msra.mxu0 %v251
    %270 = vmatprep.subr.mxu0 0.0
    %271 = vmatpush1.msra.mxu0 %v252
    %272 = vmatprep.subr.mxu0 0.0
    %273 = vmatpush1.msra.mxu0 %v253
    %274 = vmatprep.subr.mxu0 0.0
    %275 = vmatpush1.msra.mxu0 %v254
    %276 = vmatprep.subr.mxu0 0.0
    %277 = vmatpush1.msra.mxu0 %v255
    %278 = vmatprep.subr.mxu0 0.0
    %279 = vmatpush1.msra.mxu0 %v256
    %280 = vmatprep.subr.mxu0 0.0
    %281 = vmatpush1.msra.mxu0 %v257
    %282 = vmatprep.subr.mxu0 0.0
    %283 = vmatpush1.msra.mxu0 %v258
    %284 = vmatprep.subr.mxu0 0.0
    %285 = vmatpush1.msra.mxu0 %v259
    %286 = vmatprep.subr.mxu0 0.0
    %287 = vmatpush1.msra.mxu0 %v260
    %288 = vmatprep.subr.mxu0 0.0
    %289 = vmatpush1.msra.mxu0 %v261
    %290 = vmatprep.subr.mxu0 0.0
    %291 = vmatpush1.msra.mxu0 %v262
    %292 = vmatprep.subr.mxu0 0.0
    %293 = vmatpush1.msra.mxu0 %v263
    %294 = vmatprep.subr.mxu0 0.0
    %295 = vmatpush1.msra.mxu0 %v264
    %296 = vmatprep.subr.mxu0 0.0
    %297 = vmatpush1.msra.mxu0 %v265
    %298 = vmatprep.subr.mxu0 0.0
    %299 = vmatpush1.msra.mxu0 0.0
    %300 = vmatprep.subr.mxu0 0.0
    %301 = vmatpush1.msra.mxu0 0.0
    %302 = vmatprep.subr.mxu0 0.0
    %303 = vmatpush1.msra.mxu0 0.0
    %304 = vmatprep.subr.mxu0 0.0
    %305 = vmatpush1.msra.mxu0 0.0
    %306 = vmatprep.subr.mxu0 0.0
    %307 = vmatpush1.msra.mxu0 0.0
    %308 = vmatprep.subr.mxu0 0.0
    %309 = vmatpush1.msra.mxu0 0.0
    %310 = vmatprep.subr.mxu0 0.0
    %311 = vmatpush1.msra.mxu0 0.0
    %312 = vmatprep.subr.mxu0 0.0
    %313 = vmatpush1.msra.mxu0 0.0
    %314 = vmatprep.subr.mxu0 0.0
    %315 = vmatpush1.msra.mxu0 0.0
    %316 = vmatprep.subr.mxu0 0.0
    %317 = vmatpush1.msra.mxu0 0.0
    %318 = vmatprep.subr.mxu0 0.0
    %319 = vmatpush1.msra.mxu0 0.0
    %320 = vmatprep.subr.mxu0 0.0
    %321 = vmatpush1.msra.mxu0 0.0
    %322 = vmatprep.subr.mxu0 0.0
    %323 = vmatpush1.msra.mxu0 0.0
    %324 = vmatprep.subr.mxu0 0.0
    %325 = vmatpush1.msra.mxu0 0.0
    %326 = vmatprep.subr.mxu0 0.0
    %327 = vmatpush1.msra.mxu0 0.0
    %328 = vmatprep.subr.mxu0 0.0
    %329 = vmatpush1.msra.mxu0 0.0
    %330 = vmatprep.mubr.f32.mxu0 0.0
    %331 = vmatmul.mubr.f32.gmra.mrb[0].mxu0 %v249
    %v332 = vpop.f32.mrb[0].mxu0
    %v333 = vadd.f32 0.0, %v332
    %v334 = vpop.f32.mrb[0].mxu0
    %335 = vdwg.mxu0
    %v336 = vmax.f32 %v333, 0.0
    %337 = vst [vmem:[%s4] sm:$0xff] %v336
    // Predicated region
    $region34: #{fused_mlp.1} parent=1 // pred_check
      _
    $region35: #{fused_mlp.1} parent=1 // pred_check_branch
      %339 = sbr.rel (0) target = $region37
    $region36: #{fused_mlp.1} parent=1 // pred_region
      _
    $region37: #{fused_mlp.1} parent=1 // pred_fallthru
      _
    // Predicated region
    $region38: #{fused_mlp.1} parent=1 // pred_check
      _
    $region39: #{fused_mlp.1} parent=1 // pred_check_branch
      %341 = sbr.rel (0) target = $region41
    $region40: #{fused_mlp.1} parent=1 // pred_region
      _
    $region41: #{fused_mlp.1} parent=1 // pred_fallthru
      _
    %342 = vsyncpa [#allocation3], 1
    %343 = vsyncpa [#allocation5], 1
    %344 = vsyncpa [#allocation8], 1

</llo_original>
